<compile_context>
chip_gen: v5e
topology: v5e:2x2
jax: 0.10.0
libtpu: 0.0.40
codegen_flags: <defaults>
</compile_context>

<pallas_src>
import jax
import jax.numpy as jnp
from jax.experimental import pallas as pl
from jax.experimental.pallas import tpu as pltpu

# ----------------------------- configuration --------------------------------
N_ESTIMATORS = 512          # matches module default n_estimators=512
TREE_DEPTH = 4              # oblivious-tree depth (max_depth=None -> fixed)
N_LEAVES = 1 << TREE_DEPTH  # 16
N_FEATURES = 32
BATCH = 8

MAX_TILE_N = 1024           # batch-tile cap (per-step overhead amortization)
TREE_CHUNK = 128            # lane-width chunk of the tree axis per loop iter


# ------------------------------ Pallas kernel --------------------------------
def _rf_predict_kernel(x_ref, sel_ref, thr_ref, leafv_ref, label_ref, score_ref):
    """Evaluate the full forest for one batch tile.

    x_ref     : [tile_n, F]        f32   input features
    sel_ref   : [C, D, F, TC]      f32   0/1 one-hot feature-selection matrix,
                                         chunk-major over the tree axis
    thr_ref   : [C, D, 1, TC]      f32   split thresholds
    leafv_ref : [C, L, TC]         f32   per-leaf class-1 prob, pre-scaled 1/T
    label_ref : [tile_n, 1]        f32   predicted class label (0.0 / 1.0)
    score_ref : [tile_n, 1]        f32   mean class-1 probability (diagnostic)
    """
    n = x_ref.shape[0]
    n_chunks, depth, _, _ = sel_ref.shape
    n_leaves = leafv_ref.shape[1]

    x = x_ref[...]                                    # [N, F], hoisted once

    def chunk_body(c, score):
        # Dynamic leading-axis indexing of resident VMEM weights (cheap).
        sel_c = sel_ref[c]                            # [D, F, TC]  (0/1)
        thr_c = thr_ref[c]                            # [D, 1, TC]
        lv_c = leafv_ref[c]                           # [L, TC]

        # Per-depth split bits: one small MXU matmul gathers the feature used
        # at each (depth, tree) split (sel is exactly 0/1 so this is exact),
        # then a single f32 compare against the threshold.
        bits = []
        for dd in range(depth):
            sv = jnp.dot(x, sel_c[dd],
                         preferred_element_type=jnp.float32)   # [N, TC]
            bits.append(sv > thr_c[dd])                        # bool [N, TC]

        # Depth-first binary select tree: fold the 16 leaf-value rows
        # 16 -> 8 -> 4 -> 2 -> 1 using the depth masks.  15 selects total,
        # leaf-level operands are [1, TC] rows broadcast over the batch.
        def pick(lo, size):
            if size == 1:
                return lv_c[lo:lo + 1, :]                      # [1, TC]
            half = size // 2
            b = bits[half.bit_length() - 1]                    # bit log2(half)
            return jnp.where(b, pick(lo + half, half), pick(lo, half))

        leaf = pick(0, n_leaves)                               # [N, TC]
        return score + jnp.sum(leaf, axis=1, keepdims=True)    # [N, 1]

    score = jax.lax.fori_loop(0, n_chunks, chunk_body,
                              jnp.zeros((n, 1), jnp.float32))

    # Ensemble vote: 1/T already folded into leafv, so sum + 0.5 threshold.
    score_ref[...] = score
    label_ref[...] = (score > 0.5).astype(jnp.float32)


# ------------------------------- wrapper --------------------------------------
def _pick_tile_n(n):
    """Largest batch tile <= MAX_TILE_N dividing n; >=2 grid steps when large."""
    if n <= 256:
        return n
    cap = min(MAX_TILE_N, n // 2)   # >=2 "parallel" steps -> both v7x TCs busy
    cap -= cap % 8
    for t in range(cap, 7, -8):     # second-minor block dim must be 8-aligned
        if n % t == 0:
            return t
    return n                        # fallback: single full-array tile


@jax.jit
def rf_predict(x, sel, thr, leafv_lt):
    n, f = x.shape
    l, t = leafv_lt.shape
    d = thr.shape[1] // t
    assert t % TREE_CHUNK == 0
    c = t // TREE_CHUNK

    # Re-layout the (tiny, resident) weights chunk-major over the tree axis so
    # the kernel's fori_loop can index them on the leading axis.
    sel_c = sel.reshape(f, d, c, TREE_CHUNK).transpose(2, 1, 0, 3)    # [C,D,F,TC]
    thr_c = thr.reshape(1, d, c, TREE_CHUNK).transpose(2, 1, 0, 3)    # [C,D,1,TC]
    leafv_c = leafv_lt.reshape(l, c, TREE_CHUNK).transpose(1, 0, 2)   # [C,L,TC]

    tile_n = _pick_tile_n(n)
    assert n % tile_n == 0
    grid = (n // tile_n,)

    label, score = pl.pallas_call(
        _rf_predict_kernel,
        out_shape=(jax.ShapeDtypeStruct((n, 1), jnp.float32),
                   jax.ShapeDtypeStruct((n, 1), jnp.float32)),
        grid_spec=pltpu.PrefetchScalarGridSpec(
            num_scalar_prefetch=0,
            grid=grid,
            in_specs=[
                pl.BlockSpec((tile_n, f), lambda i: (i, 0)),              # batch tile
                pl.BlockSpec((c, d, f, TREE_CHUNK), lambda i: (0, 0, 0, 0)),
                pl.BlockSpec((c, d, 1, TREE_CHUNK), lambda i: (0, 0, 0, 0)),
                pl.BlockSpec((c, l, TREE_CHUNK), lambda i: (0, 0, 0)),
            ],
            out_specs=[
                pl.BlockSpec((tile_n, 1), lambda i: (i, 0)),
                pl.BlockSpec((tile_n, 1), lambda i: (i, 0)),
            ],
        ),
        compiler_params=pltpu.CompilerParams(
            dimension_semantics=("parallel",),
            vmem_limit_bytes=32 * 1024 * 1024),
    )(x, sel_c, thr_c, leafv_c)
    return label, score


# ----------------------- deterministic parameter setup -----------------------
def make_forest_params(key, n_trees, depth, n_features):
    k_feat, k_thr, k_leaf = jax.random.split(key, 3)
    td = depth * n_trees
    # Depth-major column layout: column index = d * n_trees + t.
    feat_idx = jax.random.randint(k_feat, (td,), 0, n_features)            # int32
    sel = jax.nn.one_hot(feat_idx, n_features, dtype=jnp.float32).T        # [F, D*T]
    thr = jax.random.normal(k_thr, (1, td), dtype=jnp.float32)             # [1, D*T]
    leaf_vals = jax.random.uniform(k_leaf, (n_trees, 1 << depth),
                                   dtype=jnp.float32)                      # [T, L]
    # Fold the 1/n_trees ensemble average into the leaf values; [L, T] so each
    # leaf's row is lane-dense over trees.
    leafv_lt = (leaf_vals / n_trees).T                                     # [L, T]
    return sel, thr, leafv_lt


def rf_predict_reference(x, sel, thr, leafv_lt):
    """Pure-JAX reference for correctness checking."""
    n = x.shape[0]
    l, t = leafv_lt.shape
    d = thr.shape[1] // t
    selected = x @ sel                                                      # [N, D*T]
    bits = (selected > thr).astype(jnp.int32).reshape(n, d, t)              # [N, D, T]
    pow2 = (1 << jnp.arange(d, dtype=jnp.int32))[None, :, None]
    leaf_idx = jnp.sum(bits * pow2, axis=1)                                 # [N, T]
    probs = jnp.take_along_axis(leafv_lt.T[None, :, :],                     # [1, T, L]
                                leaf_idx[:, :, None], axis=2)[..., 0]       # [N, T]
    score = jnp.sum(probs, axis=1, keepdims=True)                           # [N, 1]
    return (score > 0.5).astype(jnp.float32), score


if __name__ == "__main__":
    key = jax.random.PRNGKey(0)
    k_params, k_x = jax.random.split(key)

    sel, thr, leafv = make_forest_params(
        k_params, N_ESTIMATORS, TREE_DEPTH, N_FEATURES)
    x = jax.random.normal(k_x, (BATCH, N_FEATURES), dtype=jnp.float32)

    label, score = rf_predict(x, sel, thr, leafv)
    jax.block_until_ready((label, score))

    ref_label, ref_score = rf_predict_reference(x, sel, thr, leafv)
    assert label.shape == (BATCH, 1) and score.shape == (BATCH, 1)
    # Scores must agree to fp32 reduction-order tolerance ...
    assert jnp.allclose(score, ref_score, rtol=1e-5, atol=1e-5), (score, ref_score)
    # ... and labels must agree wherever the score is clearly away from 0.5
    # (exact label equality is brittle for scores within ~1 ulp of threshold).
    decided = jnp.abs(ref_score - 0.5) > 1e-4
    assert bool(jnp.all(jnp.where(decided, label == ref_label, True))), (label, ref_label)

    print("KERNEL_OK")
</pallas_src>

<mosaic_0001>
module attributes {stable_mosaic.version = 11 : i64} {
  func.func @_rf_predict_kernel(%arg0: i32, %arg1: memref<8x32xf32, #tpu.memory_space<vmem>>, %arg2: memref<4x4x32x128xf32, #tpu.memory_space<vmem>>, %arg3: memref<4x4x1x128xf32, #tpu.memory_space<vmem>>, %arg4: memref<4x16x128xf32, #tpu.memory_space<vmem>>, %arg5: memref<8x1xf32, #tpu.memory_space<vmem>>, %arg6: memref<8x1xf32, #tpu.memory_space<vmem>>) attributes {dimension_semantics = [#tpu.dimension_semantics<parallel>], iteration_bounds = array<i64: 1>, scalar_prefetch = 0 : i64, scratch_operands = 0 : i64, tpu.core_type = #tpu.core_type<tc>, window_params = [{transform_indices = @transform_0, window_bounds = array<i64: 8, 32>}, {pipeline_mode = #tpu.pipeline_mode<synchronous>, transform_indices = @transform_1, window_bounds = array<i64: 4, 4, 32, 128>}, {pipeline_mode = #tpu.pipeline_mode<synchronous>, transform_indices = @transform_2, window_bounds = array<i64: 4, 4, 1, 128>}, {pipeline_mode = #tpu.pipeline_mode<synchronous>, transform_indices = @transform_3, window_bounds = array<i64: 4, 16, 128>}, {transform_indices = @transform_4, window_bounds = array<i64: 8, 1>}, {transform_indices = @transform_5, window_bounds = array<i64: 8, 1>}]} {
    %c0 = arith.constant 0 : index
    %c0_0 = arith.constant 0 : index
    %0 = vector.load %arg1[%c0, %c0_0] : memref<8x32xf32, #tpu.memory_space<vmem>>, vector<8x32xf32>
    %cst = arith.constant 0.000000e+00 : f32
    %1 = vector.broadcast %cst : f32 to vector<8x1xf32>
    %c0_i32 = arith.constant 0 : i32
    %c4_i32 = arith.constant 4 : i32
    %2 = arith.addi %c0_i32, %c4_i32 : i32
    %c1_i32 = arith.constant 1 : i32
    %3 = scf.for %arg7 = %c0_i32 to %2 step %c1_i32 iter_args(%arg8 = %1) -> (vector<8x1xf32>)  : i32 {
      %10 = arith.index_cast %arg7 : i32 to index
      %c0_7 = arith.constant 0 : index
      %c0_8 = arith.constant 0 : index
      %c0_9 = arith.constant 0 : index
      %11 = vector.load %arg2[%10, %c0_7, %c0_8, %c0_9] : memref<4x4x32x128xf32, #tpu.memory_space<vmem>>, vector<1x4x32x128xf32>
      %12 = vector.shape_cast %11 : vector<1x4x32x128xf32> to vector<4x32x128xf32>
      %13 = arith.index_cast %arg7 : i32 to index
      %c0_10 = arith.constant 0 : index
      %c0_11 = arith.constant 0 : index
      %c0_12 = arith.constant 0 : index
      %14 = vector.load %arg3[%13, %c0_10, %c0_11, %c0_12] : memref<4x4x1x128xf32, #tpu.memory_space<vmem>>, vector<1x4x1x128xf32>
      %15 = vector.shape_cast %14 : vector<1x4x1x128xf32> to vector<4x1x128xf32>
      %16 = arith.index_cast %arg7 : i32 to index
      %c0_13 = arith.constant 0 : index
      %c0_14 = arith.constant 0 : index
      %17 = vector.load %arg4[%16, %c0_13, %c0_14] : memref<4x16x128xf32, #tpu.memory_space<vmem>>, vector<1x16x128xf32>
      %18 = vector.shape_cast %17 : vector<1x16x128xf32> to vector<16x128xf32>
      %19 = vector.extract_strided_slice %12 {offsets = [0, 0, 0], sizes = [1, 32, 128], strides = [1, 1, 1]} : vector<4x32x128xf32> to vector<1x32x128xf32>
      %20 = vector.shape_cast %19 : vector<1x32x128xf32> to vector<32x128xf32>
      %cst_15 = arith.constant dense<0.000000e+00> : vector<8x128xf32>
      %21 = tpu.matmul %0, %20, %cst_15 {dimension_numbers = #tpu.dot_dimension_numbers<[1], [0], [0], [1], [0, 0, 1, 1], [], []>} : vector<8x32xf32>, vector<32x128xf32>, vector<8x128xf32> -> vector<8x128xf32>
      %22 = vector.extract_strided_slice %15 {offsets = [0, 0, 0], sizes = [1, 1, 128], strides = [1, 1, 1]} : vector<4x1x128xf32> to vector<1x1x128xf32>
      %23 = vector.shape_cast %22 : vector<1x1x128xf32> to vector<1x128xf32>
      %24 = vector.broadcast %23 : vector<1x128xf32> to vector<8x128xf32>
      %25 = arith.cmpf ogt, %21, %24 : vector<8x128xf32>
      %26 = vector.extract_strided_slice %12 {offsets = [1, 0, 0], sizes = [1, 32, 128], strides = [1, 1, 1]} : vector<4x32x128xf32> to vector<1x32x128xf32>
      %27 = vector.shape_cast %26 : vector<1x32x128xf32> to vector<32x128xf32>
      %cst_16 = arith.constant dense<0.000000e+00> : vector<8x128xf32>
      %28 = tpu.matmul %0, %27, %cst_16 {dimension_numbers = #tpu.dot_dimension_numbers<[1], [0], [0], [1], [0, 0, 1, 1], [], []>} : vector<8x32xf32>, vector<32x128xf32>, vector<8x128xf32> -> vector<8x128xf32>
      %29 = vector.extract_strided_slice %15 {offsets = [1, 0, 0], sizes = [1, 1, 128], strides = [1, 1, 1]} : vector<4x1x128xf32> to vector<1x1x128xf32>
      %30 = vector.shape_cast %29 : vector<1x1x128xf32> to vector<1x128xf32>
      %31 = vector.broadcast %30 : vector<1x128xf32> to vector<8x128xf32>
      %32 = arith.cmpf ogt, %28, %31 : vector<8x128xf32>
      %33 = vector.extract_strided_slice %12 {offsets = [2, 0, 0], sizes = [1, 32, 128], strides = [1, 1, 1]} : vector<4x32x128xf32> to vector<1x32x128xf32>
      %34 = vector.shape_cast %33 : vector<1x32x128xf32> to vector<32x128xf32>
      %cst_17 = arith.constant dense<0.000000e+00> : vector<8x128xf32>
      %35 = tpu.matmul %0, %34, %cst_17 {dimension_numbers = #tpu.dot_dimension_numbers<[1], [0], [0], [1], [0, 0, 1, 1], [], []>} : vector<8x32xf32>, vector<32x128xf32>, vector<8x128xf32> -> vector<8x128xf32>
      %36 = vector.extract_strided_slice %15 {offsets = [2, 0, 0], sizes = [1, 1, 128], strides = [1, 1, 1]} : vector<4x1x128xf32> to vector<1x1x128xf32>
      %37 = vector.shape_cast %36 : vector<1x1x128xf32> to vector<1x128xf32>
      %38 = vector.broadcast %37 : vector<1x128xf32> to vector<8x128xf32>
      %39 = arith.cmpf ogt, %35, %38 : vector<8x128xf32>
      %40 = vector.extract_strided_slice %12 {offsets = [3, 0, 0], sizes = [1, 32, 128], strides = [1, 1, 1]} : vector<4x32x128xf32> to vector<1x32x128xf32>
      %41 = vector.shape_cast %40 : vector<1x32x128xf32> to vector<32x128xf32>
      %cst_18 = arith.constant dense<0.000000e+00> : vector<8x128xf32>
      %42 = tpu.matmul %0, %41, %cst_18 {dimension_numbers = #tpu.dot_dimension_numbers<[1], [0], [0], [1], [0, 0, 1, 1], [], []>} : vector<8x32xf32>, vector<32x128xf32>, vector<8x128xf32> -> vector<8x128xf32>
      %43 = vector.extract_strided_slice %15 {offsets = [3, 0, 0], sizes = [1, 1, 128], strides = [1, 1, 1]} : vector<4x1x128xf32> to vector<1x1x128xf32>
      %44 = vector.shape_cast %43 : vector<1x1x128xf32> to vector<1x128xf32>
      %45 = vector.broadcast %44 : vector<1x128xf32> to vector<8x128xf32>
      %46 = arith.cmpf ogt, %42, %45 : vector<8x128xf32>
      %47 = vector.extract_strided_slice %18 {offsets = [15, 0], sizes = [1, 128], strides = [1, 1]} : vector<16x128xf32> to vector<1x128xf32>
      %48 = vector.extract_strided_slice %18 {offsets = [14, 0], sizes = [1, 128], strides = [1, 1]} : vector<16x128xf32> to vector<1x128xf32>
      %49 = vector.shape_cast %47 : vector<1x128xf32> to vector<1x128xf32>
      %50 = vector.broadcast %49 : vector<1x128xf32> to vector<8x128xf32>
      %51 = vector.shape_cast %48 : vector<1x128xf32> to vector<1x128xf32>
      %52 = vector.broadcast %51 : vector<1x128xf32> to vector<8x128xf32>
      %53 = arith.select %25, %50, %52 : vector<8x128xi1>, vector<8x128xf32>
      %54 = vector.extract_strided_slice %18 {offsets = [13, 0], sizes = [1, 128], strides = [1, 1]} : vector<16x128xf32> to vector<1x128xf32>
      %55 = vector.extract_strided_slice %18 {offsets = [12, 0], sizes = [1, 128], strides = [1, 1]} : vector<16x128xf32> to vector<1x128xf32>
      %56 = vector.shape_cast %54 : vector<1x128xf32> to vector<1x128xf32>
      %57 = vector.broadcast %56 : vector<1x128xf32> to vector<8x128xf32>
      %58 = vector.shape_cast %55 : vector<1x128xf32> to vector<1x128xf32>
      %59 = vector.broadcast %58 : vector<1x128xf32> to vector<8x128xf32>
      %60 = arith.select %25, %57, %59 : vector<8x128xi1>, vector<8x128xf32>
      %61 = arith.select %32, %53, %60 : vector<8x128xi1>, vector<8x128xf32>
      %62 = vector.extract_strided_slice %18 {offsets = [11, 0], sizes = [1, 128], strides = [1, 1]} : vector<16x128xf32> to vector<1x128xf32>
      %63 = vector.extract_strided_slice %18 {offsets = [10, 0], sizes = [1, 128], strides = [1, 1]} : vector<16x128xf32> to vector<1x128xf32>
      %64 = vector.shape_cast %62 : vector<1x128xf32> to vector<1x128xf32>
      %65 = vector.broadcast %64 : vector<1x128xf32> to vector<8x128xf32>
      %66 = vector.shape_cast %63 : vector<1x128xf32> to vector<1x128xf32>
      %67 = vector.broadcast %66 : vector<1x128xf32> to vector<8x128xf32>
      %68 = arith.select %25, %65, %67 : vector<8x128xi1>, vector<8x128xf32>
      %69 = vector.extract_strided_slice %18 {offsets = [9, 0], sizes = [1, 128], strides = [1, 1]} : vector<16x128xf32> to vector<1x128xf32>
      %70 = vector.extract_strided_slice %18 {offsets = [8, 0], sizes = [1, 128], strides = [1, 1]} : vector<16x128xf32> to vector<1x128xf32>
      %71 = vector.shape_cast %69 : vector<1x128xf32> to vector<1x128xf32>
      %72 = vector.broadcast %71 : vector<1x128xf32> to vector<8x128xf32>
      %73 = vector.shape_cast %70 : vector<1x128xf32> to vector<1x128xf32>
      %74 = vector.broadcast %73 : vector<1x128xf32> to vector<8x128xf32>
      %75 = arith.select %25, %72, %74 : vector<8x128xi1>, vector<8x128xf32>
      %76 = arith.select %32, %68, %75 : vector<8x128xi1>, vector<8x128xf32>
      %77 = arith.select %39, %61, %76 : vector<8x128xi1>, vector<8x128xf32>
      %78 = vector.extract_strided_slice %18 {offsets = [7, 0], sizes = [1, 128], strides = [1, 1]} : vector<16x128xf32> to vector<1x128xf32>
      %79 = vector.extract_strided_slice %18 {offsets = [6, 0], sizes = [1, 128], strides = [1, 1]} : vector<16x128xf32> to vector<1x128xf32>
      %80 = vector.shape_cast %78 : vector<1x128xf32> to vector<1x128xf32>
      %81 = vector.broadcast %80 : vector<1x128xf32> to vector<8x128xf32>
      %82 = vector.shape_cast %79 : vector<1x128xf32> to vector<1x128xf32>
      %83 = vector.broadcast %82 : vector<1x128xf32> to vector<8x128xf32>
      %84 = arith.select %25, %81, %83 : vector<8x128xi1>, vector<8x128xf32>
      %85 = vector.extract_strided_slice %18 {offsets = [5, 0], sizes = [1, 128], strides = [1, 1]} : vector<16x128xf32> to vector<1x128xf32>
      %86 = vector.extract_strided_slice %18 {offsets = [4, 0], sizes = [1, 128], strides = [1, 1]} : vector<16x128xf32> to vector<1x128xf32>
      %87 = vector.shape_cast %85 : vector<1x128xf32> to vector<1x128xf32>
      %88 = vector.broadcast %87 : vector<1x128xf32> to vector<8x128xf32>
      %89 = vector.shape_cast %86 : vector<1x128xf32> to vector<1x128xf32>
      %90 = vector.broadcast %89 : vector<1x128xf32> to vector<8x128xf32>
      %91 = arith.select %25, %88, %90 : vector<8x128xi1>, vector<8x128xf32>
      %92 = arith.select %32, %84, %91 : vector<8x128xi1>, vector<8x128xf32>
      %93 = vector.extract_strided_slice %18 {offsets = [3, 0], sizes = [1, 128], strides = [1, 1]} : vector<16x128xf32> to vector<1x128xf32>
      %94 = vector.extract_strided_slice %18 {offsets = [2, 0], sizes = [1, 128], strides = [1, 1]} : vector<16x128xf32> to vector<1x128xf32>
      %95 = vector.shape_cast %93 : vector<1x128xf32> to vector<1x128xf32>
      %96 = vector.broadcast %95 : vector<1x128xf32> to vector<8x128xf32>
      %97 = vector.shape_cast %94 : vector<1x128xf32> to vector<1x128xf32>
      %98 = vector.broadcast %97 : vector<1x128xf32> to vector<8x128xf32>
      %99 = arith.select %25, %96, %98 : vector<8x128xi1>, vector<8x128xf32>
      %100 = vector.extract_strided_slice %18 {offsets = [1, 0], sizes = [1, 128], strides = [1, 1]} : vector<16x128xf32> to vector<1x128xf32>
      %101 = vector.extract_strided_slice %18 {offsets = [0, 0], sizes = [1, 128], strides = [1, 1]} : vector<16x128xf32> to vector<1x128xf32>
      %102 = vector.shape_cast %100 : vector<1x128xf32> to vector<1x128xf32>
      %103 = vector.broadcast %102 : vector<1x128xf32> to vector<8x128xf32>
      %104 = vector.shape_cast %101 : vector<1x128xf32> to vector<1x128xf32>
      %105 = vector.broadcast %104 : vector<1x128xf32> to vector<8x128xf32>
      %106 = arith.select %25, %103, %105 : vector<8x128xi1>, vector<8x128xf32>
      %107 = arith.select %32, %99, %106 : vector<8x128xi1>, vector<8x128xf32>
      %108 = arith.select %39, %92, %107 : vector<8x128xi1>, vector<8x128xf32>
      %109 = arith.select %46, %77, %108 : vector<8x128xi1>, vector<8x128xf32>
      %cst_19 = arith.constant dense<0.000000e+00> : vector<8xf32>
      %110 = vector.multi_reduction <add>, %109, %cst_19 [1] : vector<8x128xf32> to vector<8xf32>
      %111 = vector.shape_cast %110 : vector<8xf32> to vector<8x1xf32>
      %112 = arith.addf %arg8, %111 : vector<8x1xf32>
      scf.yield %112 : vector<8x1xf32>
    }
    %c4_i32_1 = arith.constant 4 : i32
    %c0_2 = arith.constant 0 : index
    %c0_3 = arith.constant 0 : index
    %4 = vector.load %arg6[%c0_2, %c0_3] : memref<8x1xf32, #tpu.memory_space<vmem>>, vector<8x1xf32>
    tpu.vector_store %arg6[%c0_2, %c0_3], %3 {strides = array<i32>} : memref<8x1xf32, #tpu.memory_space<vmem>>, vector<8x1xf32>,
    %cst_4 = arith.constant 5.000000e-01 : f32
    %5 = vector.broadcast %cst_4 : f32 to vector<8x1xf32>
    %6 = arith.cmpf ogt, %3, %5 : vector<8x1xf32>
    %7 = arith.extui %6 : vector<8x1xi1> to vector<8x1xi32>
    %8 = arith.sitofp %7 : vector<8x1xi32> to vector<8x1xf32>
    %c0_5 = arith.constant 0 : index
    %c0_6 = arith.constant 0 : index
    %9 = vector.load %arg5[%c0_5, %c0_6] : memref<8x1xf32, #tpu.memory_space<vmem>>, vector<8x1xf32>
    tpu.vector_store %arg5[%c0_5, %c0_6], %8 {strides = array<i32>} : memref<8x1xf32, #tpu.memory_space<vmem>>, vector<8x1xf32>,
    return
  }
  func.func @transform_0(%arg0: i32) -> (i32, i32) {
    %c0_i32 = arith.constant 0 : i32
    %c0_i32_0 = arith.constant 0 : i32
    return %arg0, %c0_i32 : i32, i32
  }
  func.func @transform_1(%arg0: i32) -> (i32, i32, i32, i32) {
    %c0_i32 = arith.constant 0 : i32
    %c0_i32_0 = arith.constant 0 : i32
    %c0_i32_1 = arith.constant 0 : i32
    %c0_i32_2 = arith.constant 0 : i32
    %c0_i32_3 = arith.constant 0 : i32
    return %c0_i32, %c0_i32_0, %c0_i32_1, %c0_i32_2 : i32, i32, i32, i32
  }
  func.func @transform_2(%arg0: i32) -> (i32, i32, i32, i32) {
    %c0_i32 = arith.constant 0 : i32
    %c0_i32_0 = arith.constant 0 : i32
    %c0_i32_1 = arith.constant 0 : i32
    %c0_i32_2 = arith.constant 0 : i32
    %c0_i32_3 = arith.constant 0 : i32
    return %c0_i32, %c0_i32_0, %c0_i32_1, %c0_i32_2 : i32, i32, i32, i32
  }
  func.func @transform_3(%arg0: i32) -> (i32, i32, i32) {
    %c0_i32 = arith.constant 0 : i32
    %c0_i32_0 = arith.constant 0 : i32
    %c0_i32_1 = arith.constant 0 : i32
    %c0_i32_2 = arith.constant 0 : i32
    return %c0_i32, %c0_i32_0, %c0_i32_1 : i32, i32, i32
  }
  func.func @transform_4(%arg0: i32) -> (i32, i32) {
    %c0_i32 = arith.constant 0 : i32
    %c0_i32_0 = arith.constant 0 : i32
    return %arg0, %c0_i32 : i32, i32
  }
  func.func @transform_5(%arg0: i32) -> (i32, i32) {
    %c0_i32 = arith.constant 0 : i32
    %c0_i32_0 = arith.constant 0 : i32
    return %arg0, %c0_i32 : i32, i32
  }
}

</mosaic_0001>

<llo_original>
// kernel: rf_predict.1
$region0: #{rf_predict.1}
  #allocation0 [shape = 'u32[]', space=smem, size = 0x4, offset = 0x4, fixed_abs, tag = 'smem constant byte address 0x4 - core index']
  #allocation1 [shape = 'u32[72,128]{1,0:T(1,128)}', space=vmem, size = 0x9000, scoped, tag = 'internal scratch']
  %s0 = inlined_call_operand.vmem [shape: f32[8,32], index: 0, kind: input, shape index: {}]
  %s1 = inlined_call_operand.vmem [shape: f32[4,4,32,128], index: 1, kind: input, shape index: {}]
  %s2 = inlined_call_operand.vmem [shape: f32[4,4,1,128], index: 2, kind: input, shape index: {}]
  %s3 = inlined_call_operand.vmem [shape: f32[4,16,128], index: 3, kind: input, shape index: {}]
  %s4 = inlined_call_operand.vmem [shape: f32[8,1], index: 4, kind: output, shape index: {0}]
  %s5 = inlined_call_operand.vmem [shape: f32[8,1], index: 5, kind: output, shape index: {1}]
  %6 = xla_tuple %s4, %s5
  %s7 = sld [smem:[#allocation0]]
  $region41: #{rf_predict.1} parent=0
    _
  %s9 = ssub.s32 1, %s7
  %s10 = scalar_select 0, %s9, %s7
  // Predicated region
  $region2: #{rf_predict.1} parent=0 // pred_check
    _
  $region3: #{rf_predict.1} parent=0 // pred_check_branch
    %12 = sbr.rel (0) target = $region5
  $region4: #{rf_predict.1} parent=0 // pred_region
    _
  $region5: #{rf_predict.1} parent=0 // pred_fallthru
    _
  // Predicated region
  $region6: #{rf_predict.1} parent=0 // pred_check
    _
  $region7: #{rf_predict.1} parent=0 // pred_check_branch
    %14 = sbr.rel (0) target = $region9
  $region8: #{rf_predict.1} parent=0 // pred_region
    _
  $region9: #{rf_predict.1} parent=0 // pred_fallthru
    _
  // Predicated region
  $region10: #{rf_predict.1} parent=0 // pred_check
    _
  $region11: #{rf_predict.1} parent=0 // pred_check_branch
    %16 = sbr.rel (0) target = $region13
  $region12: #{rf_predict.1} parent=0 // pred_region
    _
  $region13: #{rf_predict.1} parent=0 // pred_fallthru
    _
  // Predicated region
  $region14: #{rf_predict.1} parent=0 // pred_check
    _
  $region15: #{rf_predict.1} parent=0 // pred_check_branch
    %18 = sbr.rel (0) target = $region17
  $region16: #{rf_predict.1} parent=0 // pred_region
    _
  $region17: #{rf_predict.1} parent=0 // pred_fallthru
    _
  %v19 = vld [vmem:[%s0] sm:$0xff]
  loop: start=0, step=1, limit=4
  $region18: #{rf_predict.1} parent=0 // loop_pre_header
    _
  $region19: #{rf_predict.1} parent=0 // loop_header
    %s21 = sphi 0, %s25
    %p22 = scmp.ge.s32.totalorder %s21, 4
    %v26 = vphi 0.0, %v188
  $region20: #{rf_predict.1} parent=0 // loop_header_branch
    %24 = sbr.rel (%p22) target = $region24
  $region21: #{rf_predict.1} parent=0 // loop_body
    %s27 = smul.u32 %s21, 128
    %s28 = scalar_lea.vmem %s1, %s27
    %v29 = vld [vmem:[%s28] sm:$0xff]
    %v30 = vld [vmem:[%s28 + $0x8] sm:$0xff]
    %v31 = vld [vmem:[%s28 + $0x10] sm:$0xff]
    %v32 = vld [vmem:[%s28 + $0x18] sm:$0xff]
    %v33 = vld [vmem:[%s28 + $0x20] sm:$0xff]
    %v34 = vld [vmem:[%s28 + $0x28] sm:$0xff]
    %v35 = vld [vmem:[%s28 + $0x30] sm:$0xff]
    %v36 = vld [vmem:[%s28 + $0x38] sm:$0xff]
    %v37 = vld [vmem:[%s28 + $0x40] sm:$0xff]
    %v38 = vld [vmem:[%s28 + $0x48] sm:$0xff]
    %v39 = vld [vmem:[%s28 + $0x50] sm:$0xff]
    %v40 = vld [vmem:[%s28 + $0x58] sm:$0xff]
    %v41 = vld [vmem:[%s28 + $0x60] sm:$0xff]
    %v42 = vld [vmem:[%s28 + $0x68] sm:$0xff]
    %v43 = vld [vmem:[%s28 + $0x70] sm:$0xff]
    %v44 = vld [vmem:[%s28 + $0x78] sm:$0xff]
    %s45 = smul.u32 %s21, 4
    %s46 = scalar_lea.vmem %s2, %s45
    %v47 = vld [vmem:[%s46] sm:$0x1]
    %v48 = vld [vmem:[%s46 + $0x1] sm:$0x1]
    %v49 = vld [vmem:[%s46 + $0x2] sm:$0x1]
    %v50 = vld [vmem:[%s46 + $0x3] sm:$0x1]
    %s51 = smul.u32 %s21, 16
    %s52 = scalar_lea.vmem %s3, %s51
    %v53 = vld [vmem:[%s52] sm:$0xff]
    %v54 = vld [vmem:[%s52 + $0x8] sm:$0xff]
    %vm55 = vcmask 261120
    %v57 = vsel %vm55, %v19, 0
    %59 = vmatpush.msra.mxu0 0.0
    %60 = vmatpush.msra.mxu0 0.0
    %61 = vmatpush.msra.mxu0 0.0
    %62 = vmatpush.msra.mxu0 0.0
    %63 = vmatpush.msra.mxu0 0.0
    %64 = vmatpush.msra.mxu0 0.0
    %65 = vmatpush.msra.mxu0 0.0
    %66 = vmatpush.msra.mxu0 0.0
    %67 = vmatpush.msra.mxu0 0.0
    %68 = vmatpush.msra.mxu0 0.0
    %69 = vmatpush.msra.mxu0 0.0
    %70 = vmatpush.msra.mxu0 0.0
    %71 = vmatpush.msra.mxu0 %v32
    %72 = vmatpush.msra.mxu0 %v31
    %73 = vmatpush.msra.mxu0 %v30
    %74 = vmatpush.msra.mxu0 %v29
    %75 = vmatmul.f32.gmra.mxu0 %v57
    %v76 = vpop.f32.mrf.mxu0
    %v77 = vadd.f32 0.0, %v76
    %78 = vdwg.mxu0
    %v80 = vperm.slane %v47, 0
    %vm82 = vcmp.gt.f32.partialorder %v77, %v80
    %83 = vmatpush.msra.mxu0 0.0
    %84 = vmatpush.msra.mxu0 0.0
    %85 = vmatpush.msra.mxu0 0.0
    %86 = vmatpush.msra.mxu0 0.0
    %87 = vmatpush.msra.mxu0 0.0
    %88 = vmatpush.msra.mxu0 0.0
    %89 = vmatpush.msra.mxu0 0.0
    %90 = vmatpush.msra.mxu0 0.0
    %91 = vmatpush.msra.mxu0 0.0
    %92 = vmatpush.msra.mxu0 0.0
    %93 = vmatpush.msra.mxu0 0.0
    %94 = vmatpush.msra.mxu0 0.0
    %95 = vmatpush.msra.mxu0 %v36
    %96 = vmatpush.msra.mxu0 %v35
    %97 = vmatpush.msra.mxu0 %v34
    %98 = vmatpush.msra.mxu0 %v33
    %99 = vmatmul.f32.gmra.mxu0 %v57
    %v100 = vpop.f32.mrf.mxu0
    %v101 = vadd.f32 0.0, %v100
    %102 = vdwg.mxu0
    %v104 = vperm.slane %v48, 0
    %vm106 = vcmp.gt.f32.partialorder %v101, %v104
    %107 = vmatpush.msra.mxu0 0.0
    %108 = vmatpush.msra.mxu0 0.0
    %109 = vmatpush.msra.mxu0 0.0
    %110 = vmatpush.msra.mxu0 0.0
    %111 = vmatpush.msra.mxu0 0.0
    %112 = vmatpush.msra.mxu0 0.0
    %113 = vmatpush.msra.mxu0 0.0
    %114 = vmatpush.msra.mxu0 0.0
    %115 = vmatpush.msra.mxu0 0.0
    %116 = vmatpush.msra.mxu0 0.0
    %117 = vmatpush.msra.mxu0 0.0
    %118 = vmatpush.msra.mxu0 0.0
    %119 = vmatpush.msra.mxu0 %v40
    %120 = vmatpush.msra.mxu0 %v39
    %121 = vmatpush.msra.mxu0 %v38
    %122 = vmatpush.msra.mxu0 %v37
    %123 = vmatmul.f32.gmra.mxu0 %v57
    %v124 = vpop.f32.mrf.mxu0
    %v125 = vadd.f32 0.0, %v124
    %126 = vdwg.mxu0
    %v128 = vperm.slane %v49, 0
    %vm130 = vcmp.gt.f32.partialorder %v125, %v128
    %131 = vmatpush.msra.mxu0 0.0
    %132 = vmatpush.msra.mxu0 0.0
    %133 = vmatpush.msra.mxu0 0.0
    %134 = vmatpush.msra.mxu0 0.0
    %135 = vmatpush.msra.mxu0 0.0
    %136 = vmatpush.msra.mxu0 0.0
    %137 = vmatpush.msra.mxu0 0.0
    %138 = vmatpush.msra.mxu0 0.0
    %139 = vmatpush.msra.mxu0 0.0
    %140 = vmatpush.msra.mxu0 0.0
    %141 = vmatpush.msra.mxu0 0.0
    %142 = vmatpush.msra.mxu0 0.0
    %143 = vmatpush.msra.mxu0 %v44
    %144 = vmatpush.msra.mxu0 %v43
    %145 = vmatpush.msra.mxu0 %v42
    %146 = vmatpush.msra.mxu0 %v41
    %147 = vmatmul.f32.gmra.mxu0 %v57
    %v148 = vpop.f32.mrf.mxu0
    %v149 = vadd.f32 0.0, %v148
    %150 = vdwg.mxu0
    %v152 = vperm.slane %v50, 0
    %vm154 = vcmp.gt.f32.partialorder %v149, %v152
    %v155 = vperm.slane %v54, 7
    %v156 = vperm.slane %v54, 6
    %v157 = vsel %vm82, %v155, %v156
    %v158 = vperm.slane %v54, 5
    %v159 = vperm.slane %v54, 4
    %v160 = vsel %vm82, %v158, %v159
    %v161 = vsel %vm106, %v157, %v160
    %v162 = vperm.slane %v54, 3
    %v163 = vperm.slane %v54, 2
    %v164 = vsel %vm82, %v162, %v163
    %v165 = vperm.slane %v54, 1
    %v166 = vperm.slane %v54, 0
    %v167 = vsel %vm82, %v165, %v166
    %v168 = vsel %vm106, %v164, %v167
    %v169 = vsel %vm130, %v161, %v168
    %v170 = vperm.slane %v53, 7
    %v171 = vperm.slane %v53, 6
    %v172 = vsel %vm82, %v170, %v171
    %v173 = vperm.slane %v53, 5
    %v174 = vperm.slane %v53, 4
    %v175 = vsel %vm82, %v173, %v174
    %v176 = vsel %vm106, %v172, %v175
    %v177 = vperm.slane %v53, 3
    %v178 = vperm.slane %v53, 2
    %v179 = vsel %vm82, %v177, %v178
    %v180 = vperm.slane %v53, 1
    %v181 = vperm.slane %v53, 0
    %v182 = vsel %vm82, %v180, %v181
    %v183 = vsel %vm106, %v179, %v182
    %v184 = vsel %vm130, %v176, %v183
    %v185 = vsel %vm154, %v169, %v184
    %186 = vadd.xlane.f32.xlu0 %v185
    %v187 = vpop.xlane.xlu0 %186
    %v188 = vadd.f32 %v26, %v187
  $region22: #{rf_predict.1} parent=0 // loop_footer
    %s25 = sadd.s32 1, %s21
  $region23: #{rf_predict.1} parent=0 // loop_footer_branch
    %20 = sbr.rel target = $region19
  $region24: #{rf_predict.1} parent=0 // loop_exit
    _
  %vm189 = vcmask 7168
  %190 = vst.msk [vmem:[%s5] sm:$0xff] %vm189, %v26
  %vm191 = vcmp.gt.f32.partialorder %v26, 0.5
  %v192 = vsel %vm191, 1, 0
  %v193 = vcvt.s32.f32 %v192
  %194 = vst.msk [vmem:[%s4] sm:$0xff] %vm189, %v193
  // Predicated region
  $region25: #{rf_predict.1} parent=0 // pred_check
    _
  $region26: #{rf_predict.1} parent=0 // pred_check_branch
    %196 = sbr.rel (0) target = $region28
  $region27: #{rf_predict.1} parent=0 // pred_region
    _
  $region28: #{rf_predict.1} parent=0 // pred_fallthru
    _
  // Predicated region
  $region29: #{rf_predict.1} parent=0 // pred_check
    _
  $region30: #{rf_predict.1} parent=0 // pred_check_branch
    %198 = sbr.rel (0) target = $region32
  $region31: #{rf_predict.1} parent=0 // pred_region
    _
  $region32: #{rf_predict.1} parent=0 // pred_fallthru
    _
  // Predicated region
  $region33: #{rf_predict.1} parent=0 // pred_check
    _
  $region34: #{rf_predict.1} parent=0 // pred_check_branch
    %200 = sbr.rel (0) target = $region36
  $region35: #{rf_predict.1} parent=0 // pred_region
    _
  $region36: #{rf_predict.1} parent=0 // pred_fallthru
    _
  // Predicated region
  $region37: #{rf_predict.1} parent=0 // pred_check
    _
  $region38: #{rf_predict.1} parent=0 // pred_check_branch
    %202 = sbr.rel (0) target = $region40
  $region39: #{rf_predict.1} parent=0 // pred_region
    _
  $region40: #{rf_predict.1} parent=0 // pred_fallthru
    _

</llo_original>
